<compile_context>
chip_gen: v6e
topology: v6e:2x2x1
jax: 0.10.0
libtpu: 0.0.40
codegen_flags: <defaults>
</compile_context>

<pallas_src>
import functools

import jax
import jax.numpy as jnp
from jax.experimental import pallas as pl
from jax.experimental.pallas import tpu as pltpu

LN_EPS = 1e-5  # PyTorch nn.LayerNorm default


def _round_up(x, m):
    return (x + m - 1) // m * m


def _num_tensorcores():
    """Best-effort detection of TensorCores per chip (2 on v7x megacore)."""
    try:
        dev = jax.devices()[0]
        n = int(getattr(dev, "num_cores", 1) or 1)
        return max(1, min(2, n))
    except Exception:  # pragma: no cover - defensive
        return 1


def critic_kernel(inp_ref, w1_ref, w2_ref, wa_ref, p1_ref, p2_ref, out_ref,
                  *, state_size, action_size):
    f32 = jnp.float32
    bf16 = jnp.bfloat16

    # Packed (state | action) streaming input; slice with static lane ranges.
    x = inp_ref[:, :state_size].astype(bf16)
    a = inp_ref[:, state_size:state_size + action_size].astype(bf16)

    # Unpack small per-feature vectors (rows of the packed f32 arrays).
    b1 = p1_ref[0:1, :]
    g1 = p1_ref[1:2, :]
    be1 = p1_ref[2:3, :]
    b2 = p2_ref[0:1, :]
    g2 = p2_ref[1:2, :]
    be2 = p2_ref[2:3, :]
    ba = p2_ref[3:4, :]
    wq = p2_ref[4:5, :]           # q-head weight as a row vector (1, FC2)
    bq = p2_ref[5:6, 0:1]         # scalar bias, broadcast row (1, 1)

    # ---- state path: fc1 -> LayerNorm -> relu  (bf16 x bf16 -> f32 acc) ----
    h1 = jnp.dot(x, w1_ref[...], preferred_element_type=f32) + b1
    mu1 = jnp.mean(h1, axis=-1, keepdims=True)
    d1 = h1 - mu1
    var1 = jnp.mean(d1 * d1, axis=-1, keepdims=True)
    h1 = jnp.maximum(d1 * jax.lax.rsqrt(var1 + LN_EPS) * g1 + be1, 0.0)

    # ---- fc2 -> LayerNorm (no relu here, matching the torch code) ----
    h2 = jnp.dot(h1.astype(bf16), w2_ref[...], preferred_element_type=f32) + b2
    mu2 = jnp.mean(h2, axis=-1, keepdims=True)
    d2 = h2 - mu2
    var2 = jnp.mean(d2 * d2, axis=-1, keepdims=True)
    h2 = d2 * jax.lax.rsqrt(var2 + LN_EPS) * g2 + be2

    # ---- action path: action_value -> relu ----
    av = jnp.maximum(jnp.dot(a, wa_ref[...], preferred_element_type=f32) + ba, 0.0)

    # ---- combine -> relu -> q head (VPU multiply + lane reduce; no MXU) ----
    sa = jnp.maximum(h2 + av, 0.0)
    q = jnp.sum(sa * wq, axis=-1, keepdims=True) + bq
    out_ref[...] = q.astype(out_ref.dtype)


def critic_forward(state, action, params, *, max_block_b=1024, min_blocks=None):
    """params: dict with w1/w2/wa (bf16, (in,out)), p1 (3,FC1), p2 (6,FC2)."""
    B, state_size = state.shape
    action_size = action.shape[1]
    fc1 = params["w1"].shape[1]
    fc2 = params["w2"].shape[1]

    if min_blocks is None:
        min_blocks = _num_tensorcores()

    # Pack the two tiny streaming inputs into one (B, S+A) array -> one DMA.
    inp = jnp.concatenate([state, action], axis=1).astype(jnp.float32)

    # Batch tiling: big blocks (amortize per-step overhead), multiple of 8,
    # and at least `min_blocks` blocks when the chip has 2 TensorCores.
    B8 = _round_up(B, 8)
    nb_target = pl.cdiv(B8, max_block_b)
    if min_blocks > 1 and B8 >= 16:
        nb_target = max(nb_target, min_blocks)
    if nb_target == 1:
        bb = B8
    else:
        bb = min(max_block_b, _round_up(pl.cdiv(B8, nb_target), 8))
    Bp = _round_up(B8, bb)
    nb = Bp // bb

    if Bp != B:
        inp = jnp.pad(inp, ((0, Bp - B), (0, 0)))

    vmem = pltpu.MemorySpace.VMEM
    in_specs = [
        pl.BlockSpec((bb, state_size + action_size), lambda i: (i, 0),
                     memory_space=vmem),
        # Weights resident in VMEM across all grid steps (constant index maps).
        pl.BlockSpec((state_size, fc1), lambda i: (0, 0), memory_space=vmem),
        pl.BlockSpec((fc1, fc2), lambda i: (0, 0), memory_space=vmem),
        pl.BlockSpec((action_size, fc2), lambda i: (0, 0), memory_space=vmem),
        pl.BlockSpec((3, fc1), lambda i: (0, 0), memory_space=vmem),
        pl.BlockSpec((6, fc2), lambda i: (0, 0), memory_space=vmem),
    ]
    out_specs = pl.BlockSpec((bb, 1), lambda i: (i, 0), memory_space=vmem)

    kernel = functools.partial(critic_kernel,
                               state_size=state_size, action_size=action_size)

    out = pl.pallas_call(
        kernel,
        out_shape=jax.ShapeDtypeStruct((Bp, 1), jnp.float32),
        grid=(nb,),
        in_specs=in_specs,
        out_specs=out_specs,
        compiler_params=pltpu.CompilerParams(
            dimension_semantics=("parallel",)),
    )(inp, params["w1"], params["w2"], params["wa"],
      params["p1"], params["p2"])
    return out[:B]


def init_params(key, state_size, action_size, fc1_units, fc2_units):
    """Master (f32) parameters mirroring the module's shapes / init ranges."""
    ks = jax.random.split(key, 8)
    f1 = 1.0 / jnp.sqrt(fc1_units)      # module uses weight.size(0) == out_features
    f2 = 0.002
    f3 = 0.003
    fa = 1.0 / jnp.sqrt(action_size)
    u = lambda k, shape, s: jax.random.uniform(k, shape, jnp.float32, -s, s)
    return {
        # weights stored (in, out) = transposed nn.Linear layout
        "w1": u(ks[0], (state_size, fc1_units), f1),
        "b1": u(ks[1], (fc1_units,), f1),
        "w2": u(ks[2], (fc1_units, fc2_units), f2),
        "b2": u(ks[3], (fc2_units,), 1.0 / jnp.sqrt(fc1_units)),
        "wa": u(ks[4], (action_size, fc2_units), fa),
        "ba": u(ks[5], (fc2_units,), fa),
        "wq": u(ks[6], (fc2_units,), f3),                       # q head as a row
        "bq": u(ks[7], (), 1.0 / jnp.sqrt(fc2_units)),
        # LayerNorm affine params (default init: ones / zeros)
        "g1": jnp.ones((fc1_units,), jnp.float32),
        "be1": jnp.zeros((fc1_units,), jnp.float32),
        "g2": jnp.ones((fc2_units,), jnp.float32),
        "be2": jnp.zeros((fc2_units,), jnp.float32),
    }


def pack_params(p):
    """Kernel-side layout: bf16 big weights + packed f32 small vectors."""
    fc2 = p["w2"].shape[1]
    bq_row = jnp.full((fc2,), p["bq"], jnp.float32)
    return {
        "w1": p["w1"].astype(jnp.bfloat16),
        "w2": p["w2"].astype(jnp.bfloat16),
        "wa": p["wa"].astype(jnp.bfloat16),
        "p1": jnp.stack([p["b1"], p["g1"], p["be1"]], axis=0),                  # (3, FC1)
        "p2": jnp.stack([p["b2"], p["g2"], p["be2"], p["ba"], p["wq"], bq_row],
                        axis=0),                                                 # (6, FC2)
    }


def reference_forward(state, action, p):
    """Pure-JAX reference matching the kernel numerics (bf16 MXU operands,
    f32 accumulation / LayerNorm / biases)."""
    f32 = jnp.float32
    bf = lambda v: v.astype(jnp.bfloat16).astype(f32)
    hp = jax.lax.Precision.HIGHEST
    w1, w2, wa = bf(p["w1"]), bf(p["w2"]), bf(p["wa"])

    h1 = jnp.dot(bf(state), w1, precision=hp) + p["b1"]
    mu = h1.mean(-1, keepdims=True)
    d = h1 - mu
    var = (d * d).mean(-1, keepdims=True)
    h1 = jnp.maximum(d / jnp.sqrt(var + LN_EPS) * p["g1"] + p["be1"], 0.0)

    h2 = jnp.dot(bf(h1), w2, precision=hp) + p["b2"]
    mu = h2.mean(-1, keepdims=True)
    d = h2 - mu
    var = (d * d).mean(-1, keepdims=True)
    h2 = d / jnp.sqrt(var + LN_EPS) * p["g2"] + p["be2"]

    av = jnp.maximum(jnp.dot(bf(action), wa, precision=hp) + p["ba"], 0.0)
    sa = jnp.maximum(h2 + av, 0.0)
    return (sa * p["wq"]).sum(-1, keepdims=True) + p["bq"]


if __name__ == "__main__":
    # Small shapes consistent with the module's interface:
    # state_size=6, action_size=9; scaled-down hidden widths.
    B, STATE, ACTION, FC1, FC2 = 8, 6, 9, 512, 256

    key = jax.random.PRNGKey(0)
    k_s, k_a, k_p, k_s2, k_a2 = jax.random.split(key, 5)
    state = jax.random.normal(k_s, (B, STATE), jnp.float32)
    action = jax.random.normal(k_a, (B, ACTION), jnp.float32)

    master = init_params(k_p, STATE, ACTION, FC1, FC2)
    kparams = pack_params(master)

    # Case 1: small batch, single block.
    q = jax.block_until_ready(critic_forward(state, action, kparams))
    q_ref = reference_forward(state, action, master)
    assert q.shape == (B, 1)
    assert jnp.allclose(q, q_ref, atol=2e-3, rtol=2e-3), (q, q_ref)

    # Case 2: larger batch with forced 2 blocks (exercises the megacore split
    # path + batch padding).
    B2 = 300
    state2 = jax.random.normal(k_s2, (B2, STATE), jnp.float32)
    action2 = jax.random.normal(k_a2, (B2, ACTION), jnp.float32)
    q2 = jax.block_until_ready(
        critic_forward(state2, action2, kparams, min_blocks=2))
    q2_ref = reference_forward(state2, action2, master)
    assert q2.shape == (B2, 1)
    assert jnp.allclose(q2, q2_ref, atol=2e-3, rtol=2e-3)

    print("KERNEL_OK")
</pallas_src>

<mosaic_0001>
module attributes {stable_mosaic.version = 11 : i64} {
  func.func @critic_kernel(%arg0: i32, %arg1: memref<8x15xf32, #tpu.memory_space<vmem>>, %arg2: memref<6x512xbf16, #tpu.memory_space<vmem>>, %arg3: memref<512x256xbf16, #tpu.memory_space<vmem>>, %arg4: memref<9x256xbf16, #tpu.memory_space<vmem>>, %arg5: memref<3x512xf32, #tpu.memory_space<vmem>>, %arg6: memref<6x256xf32, #tpu.memory_space<vmem>>, %arg7: memref<8x1xf32, #tpu.memory_space<vmem>>) attributes {dimension_semantics = [#tpu.dimension_semantics<parallel>], iteration_bounds = array<i64: 1>, scalar_prefetch = 0 : i64, scratch_operands = 0 : i64, tpu.core_type = #tpu.core_type<tc>, window_params = [{transform_indices = @transform_0, window_bounds = array<i64: 8, 15>}, {pipeline_mode = #tpu.pipeline_mode<synchronous>, transform_indices = @transform_1, window_bounds = array<i64: 6, 512>}, {pipeline_mode = #tpu.pipeline_mode<synchronous>, transform_indices = @transform_2, window_bounds = array<i64: 512, 256>}, {pipeline_mode = #tpu.pipeline_mode<synchronous>, transform_indices = @transform_3, window_bounds = array<i64: 9, 256>}, {pipeline_mode = #tpu.pipeline_mode<synchronous>, transform_indices = @transform_4, window_bounds = array<i64: 3, 512>}, {pipeline_mode = #tpu.pipeline_mode<synchronous>, transform_indices = @transform_5, window_bounds = array<i64: 6, 256>}, {transform_indices = @transform_6, window_bounds = array<i64: 8, 1>}]} {
    %c0 = arith.constant 0 : index
    %c0_0 = arith.constant 0 : index
    %0 = vector.load %arg1[%c0, %c0_0] : memref<8x15xf32, #tpu.memory_space<vmem>>, vector<8x6xf32>
    %1 = arith.truncf %0 : vector<8x6xf32> to vector<8x6xbf16>
    %c0_1 = arith.constant 0 : index
    %c6 = arith.constant 6 : index
    %2 = vector.load %arg1[%c0_1, %c6] : memref<8x15xf32, #tpu.memory_space<vmem>>, vector<8x9xf32>
    %3 = arith.truncf %2 : vector<8x9xf32> to vector<8x9xbf16>
    %c0_2 = arith.constant 0 : index
    %c0_3 = arith.constant 0 : index
    %4 = vector.load %arg5[%c0_2, %c0_3] : memref<3x512xf32, #tpu.memory_space<vmem>>, vector<1x512xf32>
    %c1 = arith.constant 1 : index
    %c0_4 = arith.constant 0 : index
    %5 = vector.load %arg5[%c1, %c0_4] : memref<3x512xf32, #tpu.memory_space<vmem>>, vector<1x512xf32>
    %c2 = arith.constant 2 : index
    %c0_5 = arith.constant 0 : index
    %6 = vector.load %arg5[%c2, %c0_5] : memref<3x512xf32, #tpu.memory_space<vmem>>, vector<1x512xf32>
    %c0_6 = arith.constant 0 : index
    %c0_7 = arith.constant 0 : index
    %7 = vector.load %arg6[%c0_6, %c0_7] : memref<6x256xf32, #tpu.memory_space<vmem>>, vector<1x256xf32>
    %c1_8 = arith.constant 1 : index
    %c0_9 = arith.constant 0 : index
    %8 = vector.load %arg6[%c1_8, %c0_9] : memref<6x256xf32, #tpu.memory_space<vmem>>, vector<1x256xf32>
    %c2_10 = arith.constant 2 : index
    %c0_11 = arith.constant 0 : index
    %9 = vector.load %arg6[%c2_10, %c0_11] : memref<6x256xf32, #tpu.memory_space<vmem>>, vector<1x256xf32>
    %c3 = arith.constant 3 : index
    %c0_12 = arith.constant 0 : index
    %10 = vector.load %arg6[%c3, %c0_12] : memref<6x256xf32, #tpu.memory_space<vmem>>, vector<1x256xf32>
    %c4 = arith.constant 4 : index
    %c0_13 = arith.constant 0 : index
    %11 = vector.load %arg6[%c4, %c0_13] : memref<6x256xf32, #tpu.memory_space<vmem>>, vector<1x256xf32>
    %c5 = arith.constant 5 : index
    %c0_14 = arith.constant 0 : index
    %12 = vector.load %arg6[%c5, %c0_14] : memref<6x256xf32, #tpu.memory_space<vmem>>, vector<1x1xf32>
    %c0_15 = arith.constant 0 : index
    %c0_16 = arith.constant 0 : index
    %13 = vector.load %arg2[%c0_15, %c0_16] : memref<6x512xbf16, #tpu.memory_space<vmem>>, vector<6x512xbf16>
    %cst = arith.constant dense<0.000000e+00> : vector<8x512xf32>
    %14 = tpu.matmul %1, %13, %cst {dimension_numbers = #tpu.dot_dimension_numbers<[1], [0], [0], [1], [0, 0, 1, 1], [], []>} : vector<8x6xbf16>, vector<6x512xbf16>, vector<8x512xf32> -> vector<8x512xf32>
    %15 = vector.broadcast %4 : vector<1x512xf32> to vector<8x512xf32>
    %16 = arith.addf %14, %15 : vector<8x512xf32>
    %cst_17 = arith.constant dense<0.000000e+00> : vector<8xf32>
    %17 = vector.multi_reduction <add>, %16, %cst_17 [1] : vector<8x512xf32> to vector<8xf32>
    %18 = vector.shape_cast %17 : vector<8xf32> to vector<8x1xf32>
    %cst_18 = arith.constant 5.120000e+02 : f32
    %19 = vector.broadcast %cst_18 : f32 to vector<8x1xf32>
    %20 = arith.divf %18, %19 : vector<8x1xf32>
    %21 = vector.broadcast %20 : vector<8x1xf32> to vector<8x512xf32>
    %22 = arith.subf %16, %21 : vector<8x512xf32>
    %23 = arith.mulf %22, %22 : vector<8x512xf32>
    %cst_19 = arith.constant dense<0.000000e+00> : vector<8xf32>
    %24 = vector.multi_reduction <add>, %23, %cst_19 [1] : vector<8x512xf32> to vector<8xf32>
    %25 = vector.shape_cast %24 : vector<8xf32> to vector<8x1xf32>
    %cst_20 = arith.constant 5.120000e+02 : f32
    %26 = vector.broadcast %cst_20 : f32 to vector<8x1xf32>
    %27 = arith.divf %25, %26 : vector<8x1xf32>
    %cst_21 = arith.constant 9.99999974E-6 : f32
    %28 = vector.broadcast %cst_21 : f32 to vector<8x1xf32>
    %29 = arith.addf %27, %28 : vector<8x1xf32>
    %30 = math.rsqrt %29 : vector<8x1xf32>
    %31 = vector.broadcast %30 : vector<8x1xf32> to vector<8x512xf32>
    %32 = arith.mulf %22, %31 : vector<8x512xf32>
    %33 = vector.broadcast %5 : vector<1x512xf32> to vector<8x512xf32>
    %34 = arith.mulf %32, %33 : vector<8x512xf32>
    %35 = vector.broadcast %6 : vector<1x512xf32> to vector<8x512xf32>
    %36 = arith.addf %34, %35 : vector<8x512xf32>
    %cst_22 = arith.constant 0.000000e+00 : f32
    %37 = vector.broadcast %cst_22 : f32 to vector<8x512xf32>
    %38 = arith.maximumf %36, %37 : vector<8x512xf32>
    %39 = arith.truncf %38 : vector<8x512xf32> to vector<8x512xbf16>
    %c0_23 = arith.constant 0 : index
    %c0_24 = arith.constant 0 : index
    %40 = vector.load %arg3[%c0_23, %c0_24] : memref<512x256xbf16, #tpu.memory_space<vmem>>, vector<512x256xbf16>
    %cst_25 = arith.constant dense<0.000000e+00> : vector<8x256xf32>
    %41 = tpu.matmul %39, %40, %cst_25 {dimension_numbers = #tpu.dot_dimension_numbers<[1], [0], [0], [1], [0, 0, 1, 1], [], []>} : vector<8x512xbf16>, vector<512x256xbf16>, vector<8x256xf32> -> vector<8x256xf32>
    %42 = vector.broadcast %7 : vector<1x256xf32> to vector<8x256xf32>
    %43 = arith.addf %41, %42 : vector<8x256xf32>
    %cst_26 = arith.constant dense<0.000000e+00> : vector<8xf32>
    %44 = vector.multi_reduction <add>, %43, %cst_26 [1] : vector<8x256xf32> to vector<8xf32>
    %45 = vector.shape_cast %44 : vector<8xf32> to vector<8x1xf32>
    %cst_27 = arith.constant 2.560000e+02 : f32
    %46 = vector.broadcast %cst_27 : f32 to vector<8x1xf32>
    %47 = arith.divf %45, %46 : vector<8x1xf32>
    %48 = vector.broadcast %47 : vector<8x1xf32> to vector<8x256xf32>
    %49 = arith.subf %43, %48 : vector<8x256xf32>
    %50 = arith.mulf %49, %49 : vector<8x256xf32>
    %cst_28 = arith.constant dense<0.000000e+00> : vector<8xf32>
    %51 = vector.multi_reduction <add>, %50, %cst_28 [1] : vector<8x256xf32> to vector<8xf32>
    %52 = vector.shape_cast %51 : vector<8xf32> to vector<8x1xf32>
    %cst_29 = arith.constant 2.560000e+02 : f32
    %53 = vector.broadcast %cst_29 : f32 to vector<8x1xf32>
    %54 = arith.divf %52, %53 : vector<8x1xf32>
    %cst_30 = arith.constant 9.99999974E-6 : f32
    %55 = vector.broadcast %cst_30 : f32 to vector<8x1xf32>
    %56 = arith.addf %54, %55 : vector<8x1xf32>
    %57 = math.rsqrt %56 : vector<8x1xf32>
    %58 = vector.broadcast %57 : vector<8x1xf32> to vector<8x256xf32>
    %59 = arith.mulf %49, %58 : vector<8x256xf32>
    %60 = vector.broadcast %8 : vector<1x256xf32> to vector<8x256xf32>
    %61 = arith.mulf %59, %60 : vector<8x256xf32>
    %62 = vector.broadcast %9 : vector<1x256xf32> to vector<8x256xf32>
    %63 = arith.addf %61, %62 : vector<8x256xf32>
    %c0_31 = arith.constant 0 : index
    %c0_32 = arith.constant 0 : index
    %64 = vector.load %arg4[%c0_31, %c0_32] : memref<9x256xbf16, #tpu.memory_space<vmem>>, vector<9x256xbf16>
    %cst_33 = arith.constant dense<0.000000e+00> : vector<8x256xf32>
    %65 = tpu.matmul %3, %64, %cst_33 {dimension_numbers = #tpu.dot_dimension_numbers<[1], [0], [0], [1], [0, 0, 1, 1], [], []>} : vector<8x9xbf16>, vector<9x256xbf16>, vector<8x256xf32> -> vector<8x256xf32>
    %66 = vector.broadcast %10 : vector<1x256xf32> to vector<8x256xf32>
    %67 = arith.addf %65, %66 : vector<8x256xf32>
    %cst_34 = arith.constant 0.000000e+00 : f32
    %68 = vector.broadcast %cst_34 : f32 to vector<8x256xf32>
    %69 = arith.maximumf %67, %68 : vector<8x256xf32>
    %70 = arith.addf %63, %69 : vector<8x256xf32>
    %cst_35 = arith.constant 0.000000e+00 : f32
    %71 = vector.broadcast %cst_35 : f32 to vector<8x256xf32>
    %72 = arith.maximumf %70, %71 : vector<8x256xf32>
    %73 = vector.broadcast %11 : vector<1x256xf32> to vector<8x256xf32>
    %74 = arith.mulf %72, %73 : vector<8x256xf32>
    %cst_36 = arith.constant dense<0.000000e+00> : vector<8xf32>
    %75 = vector.multi_reduction <add>, %74, %cst_36 [1] : vector<8x256xf32> to vector<8xf32>
    %76 = vector.shape_cast %75 : vector<8xf32> to vector<8x1xf32>
    %77 = vector.broadcast %12 : vector<1x1xf32> to vector<8x1xf32>
    %78 = arith.addf %76, %77 : vector<8x1xf32>
    %c0_37 = arith.constant 0 : index
    %c0_38 = arith.constant 0 : index
    %79 = vector.load %arg7[%c0_37, %c0_38] : memref<8x1xf32, #tpu.memory_space<vmem>>, vector<8x1xf32>
    tpu.vector_store %arg7[%c0_37, %c0_38], %78 {strides = array<i32>} : memref<8x1xf32, #tpu.memory_space<vmem>>, vector<8x1xf32>,
    return
  }
  func.func @transform_0(%arg0: i32) -> (i32, i32) {
    %c0_i32 = arith.constant 0 : i32
    %c0_i32_0 = arith.constant 0 : i32
    return %arg0, %c0_i32 : i32, i32
  }
  func.func @transform_1(%arg0: i32) -> (i32, i32) {
    %c0_i32 = arith.constant 0 : i32
    %c0_i32_0 = arith.constant 0 : i32
    %c0_i32_1 = arith.constant 0 : i32
    return %c0_i32, %c0_i32_0 : i32, i32
  }
  func.func @transform_2(%arg0: i32) -> (i32, i32) {
    %c0_i32 = arith.constant 0 : i32
    %c0_i32_0 = arith.constant 0 : i32
    %c0_i32_1 = arith.constant 0 : i32
    return %c0_i32, %c0_i32_0 : i32, i32
  }
  func.func @transform_3(%arg0: i32) -> (i32, i32) {
    %c0_i32 = arith.constant 0 : i32
    %c0_i32_0 = arith.constant 0 : i32
    %c0_i32_1 = arith.constant 0 : i32
    return %c0_i32, %c0_i32_0 : i32, i32
  }
  func.func @transform_4(%arg0: i32) -> (i32, i32) {
    %c0_i32 = arith.constant 0 : i32
    %c0_i32_0 = arith.constant 0 : i32
    %c0_i32_1 = arith.constant 0 : i32
    return %c0_i32, %c0_i32_0 : i32, i32
  }
  func.func @transform_5(%arg0: i32) -> (i32, i32) {
    %c0_i32 = arith.constant 0 : i32
    %c0_i32_0 = arith.constant 0 : i32
    %c0_i32_1 = arith.constant 0 : i32
    return %c0_i32, %c0_i32_0 : i32, i32
  }
  func.func @transform_6(%arg0: i32) -> (i32, i32) {
    %c0_i32 = arith.constant 0 : i32
    %c0_i32_0 = arith.constant 0 : i32
    return %arg0, %c0_i32 : i32, i32
  }
}

</mosaic_0001>

<llo_original>
// kernel: tpu_custom_call.1
$region0: #{tpu_custom_call.1}
  #allocation0 [shape = 'u32[]', space=smem, size = 0x4, offset = 0x4, fixed_abs, tag = 'smem constant byte address 0x4 - core index']
  #allocation1 [shape = 'u32[144,128]{1,0:T(1,128)}', space=vmem, size = 0x12000, scoped, tag = 'internal scratch']
  %s0 = inlined_call_operand.hbm [shape: f32[8,15], index: 0, kind: input, shape index: {}]
  %s1 = inlined_call_operand.hbm [shape: bf16[6,512], index: 1, kind: input, shape index: {}]
  %s2 = inlined_call_operand.hbm [shape: bf16[512,256], index: 2, kind: input, shape index: {}]
  %s3 = inlined_call_operand.hbm [shape: bf16[9,256], index: 3, kind: input, shape index: {}]
  %s4 = inlined_call_operand.hbm [shape: f32[3,512], index: 4, kind: input, shape index: {}]
  %s5 = inlined_call_operand.hbm [shape: f32[6,256], index: 5, kind: input, shape index: {}]
  %s6 = inlined_call_operand.vmem [shape: f32[8,1], index: 6, kind: output, shape index: {}]
  %s7 = sld [smem:[#allocation0]]
  $region58: #{tpu_custom_call.1} parent=0
    _
  %s9 = ssub.s32 1, %s7
  %s10 = scalar_select 0, %s9, %s7
  $region1: #{tpu_custom_call.1} parent=0
    #allocation2 [shape = 'u8[4096]{0}', space=vmem, size = 0x1000, scoped, tag = 'input window, operand 0, single buffered']
    #allocation3 [shape = 's32[1]{0}', space=sflag, size = 0x4, scoped, tag = 'scoped memory for tpu_custom_call.1']
    #allocation4 [shape = 'u8[8192]{0}', space=vmem, size = 0x2000, scoped, tag = 'input window, operand 1, single buffered']
    #allocation5 [shape = 's32[1]{0}', space=sflag, size = 0x4, scoped, tag = 'scoped memory for tpu_custom_call.1']
    #allocation6 [shape = 'u8[262144]{0}', space=vmem, size = 0x40000, scoped, tag = 'input window, operand 2, single buffered']
    #allocation7 [shape = 'u8[8192]{0}', space=vmem, size = 0x2000, scoped, tag = 'input window, operand 3, single buffered']
    #allocation8 [shape = 's32[1]{0}', space=sflag, size = 0x4, scoped, tag = 'scoped memory for tpu_custom_call.1']
    #allocation9 [shape = 'u8[8192]{0}', space=vmem, size = 0x2000, scoped, tag = 'input window, operand 4, single buffered']
    #allocation10 [shape = 'u8[8192]{0}', space=vmem, size = 0x2000, scoped, tag = 'input window, operand 5, single buffered']
    #allocation11 [shape = 's32[1]{0}', space=sflag, size = 0x4, scoped, tag = 'scoped memory for tpu_custom_call.1']
    %11 = vsyncpa [#allocation3], 0
    %12 = vsyncpa [#allocation5], 0
    %13 = vsyncpa [#allocation8], 0
    %14 = vsyncpa [#allocation11], 0
    // Predicated region
    $region2: #{tpu_custom_call.1} parent=1 // pred_check
      _
    $region3: #{tpu_custom_call.1} parent=1 // pred_check_branch
      %16 = sbr.rel (0) target = $region5
    $region4: #{tpu_custom_call.1} parent=1 // pred_region
      %s18 = ssub.s32 128, 128
      %19 = vsyncadd [#allocation3], %s18
      %s21 = sshll.u32 [#allocation2], 4
      %s22 = int_to_ptr.vmem [resolvable:$true] %s21
      %24 = dma.hbm_to_vmem [thread:$0]  %s0, 128, %s22, [#allocation3]
    $region5: #{tpu_custom_call.1} parent=1 // pred_fallthru
      _
    // Predicated region
    $region6: #{tpu_custom_call.1} parent=1 // pred_check
      _
    $region7: #{tpu_custom_call.1} parent=1 // pred_check_branch
      %26 = sbr.rel (0) target = $region9
    $region8: #{tpu_custom_call.1} parent=1 // pred_region
      %s28 = ssub.s32 256, 256
      %29 = vsyncadd [#allocation5], %s28
      %s31 = sshll.u32 [#allocation4], 4
      %s32 = int_to_ptr.vmem [resolvable:$true] %s31
      %34 = dma.hbm_to_vmem [thread:$0]  %s1, 256, %s32, [#allocation5]
    $region9: #{tpu_custom_call.1} parent=1 // pred_fallthru
      _
    // Predicated region
    $region10: #{tpu_custom_call.1} parent=1 // pred_check
      _
    $region11: #{tpu_custom_call.1} parent=1 // pred_check_branch
      %36 = sbr.rel (0) target = $region13
    $region12: #{tpu_custom_call.1} parent=1 // pred_region
      %s38 = ssub.s32 8192, 8192
      %39 = vsyncadd [#allocation5], %s38
      %s40 = sshll.u32 [#allocation6], 4
      %s41 = int_to_ptr.vmem [resolvable:$true] %s40
      %46 = dma.hbm_to_vmem [thread:$0]  %s2, 8192, %s41, [#allocation5], 128, 128, 8
    $region13: #{tpu_custom_call.1} parent=1 // pred_fallthru
      _
    // Predicated region
    $region14: #{tpu_custom_call.1} parent=1 // pred_check
      _
    $region15: #{tpu_custom_call.1} parent=1 // pred_check_branch
      %48 = sbr.rel (0) target = $region17
    $region16: #{tpu_custom_call.1} parent=1 // pred_region
      %s50 = ssub.s32 256, 256
      %51 = vsyncadd [#allocation8], %s50
      %s52 = sshll.u32 [#allocation7], 4
      %s53 = int_to_ptr.vmem [resolvable:$true] %s52
      %58 = dma.hbm_to_vmem [thread:$0]  %s3, 256, %s53, [#allocation8], 128, 128, 8
    $region17: #{tpu_custom_call.1} parent=1 // pred_fallthru
      _
    // Predicated region
    $region18: #{tpu_custom_call.1} parent=1 // pred_check
      _
    $region19: #{tpu_custom_call.1} parent=1 // pred_check_branch
      %60 = sbr.rel (0) target = $region21
    $region20: #{tpu_custom_call.1} parent=1 // pred_region
      %s62 = ssub.s32 256, 256
      %63 = vsyncadd [#allocation8], %s62
      %s65 = sshll.u32 [#allocation9], 4
      %s66 = int_to_ptr.vmem [resolvable:$true] %s65
      %68 = dma.hbm_to_vmem [thread:$0]  %s4, 256, %s66, [#allocation8]
    $region21: #{tpu_custom_call.1} parent=1 // pred_fallthru
      _
    // Predicated region
    $region22: #{tpu_custom_call.1} parent=1 // pred_check
      _
    $region23: #{tpu_custom_call.1} parent=1 // pred_check_branch
      %70 = sbr.rel (0) target = $region25
    $region24: #{tpu_custom_call.1} parent=1 // pred_region
      %s72 = ssub.s32 256, 256
      %73 = vsyncadd [#allocation11], %s72
      %s75 = sshll.u32 [#allocation10], 4
      %s76 = int_to_ptr.vmem [resolvable:$true] %s75
      %78 = dma.hbm_to_vmem [thread:$0]  %s5, 256, %s76, [#allocation11]
    $region25: #{tpu_custom_call.1} parent=1 // pred_fallthru
      _
    // Predicated region
    $region26: #{tpu_custom_call.1} parent=1 // pred_check
      _
    $region27: #{tpu_custom_call.1} parent=1 // pred_check_branch
      %80 = sbr.rel (0) target = $region29
    $region28: #{tpu_custom_call.1} parent=1 // pred_region
      %81 = dma.done [#allocation3], 128
    $region29: #{tpu_custom_call.1} parent=1 // pred_fallthru
      _
    // Predicated region
    $region30: #{tpu_custom_call.1} parent=1 // pred_check
      _
    $region31: #{tpu_custom_call.1} parent=1 // pred_check_branch
      %83 = sbr.rel (0) target = $region33
    $region32: #{tpu_custom_call.1} parent=1 // pred_region
      %84 = dma.done [#allocation5], 256
    $region33: #{tpu_custom_call.1} parent=1 // pred_fallthru
      _
    // Predicated region
    $region34: #{tpu_custom_call.1} parent=1 // pred_check
      _
    $region35: #{tpu_custom_call.1} parent=1 // pred_check_branch
      %86 = sbr.rel (0) target = $region37
    $region36: #{tpu_custom_call.1} parent=1 // pred_region
      %87 = dma.done [#allocation5], 8192
    $region37: #{tpu_custom_call.1} parent=1 // pred_fallthru
      _
    // Predicated region
    $region38: #{tpu_custom_call.1} parent=1 // pred_check
      _
    $region39: #{tpu_custom_call.1} parent=1 // pred_check_branch
      %89 = sbr.rel (0) target = $region41
    $region40: #{tpu_custom_call.1} parent=1 // pred_region
      %90 = dma.done [#allocation8], 256
    $region41: #{tpu_custom_call.1} parent=1 // pred_fallthru
      _
    // Predicated region
    $region42: #{tpu_custom_call.1} parent=1 // pred_check
      _
    $region43: #{tpu_custom_call.1} parent=1 // pred_check_branch
      %92 = sbr.rel (0) target = $region45
    $region44: #{tpu_custom_call.1} parent=1 // pred_region
      %93 = dma.done [#allocation8], 256
    $region45: #{tpu_custom_call.1} parent=1 // pred_fallthru
      _
    // Predicated region
    $region46: #{tpu_custom_call.1} parent=1 // pred_check
      _
    $region47: #{tpu_custom_call.1} parent=1 // pred_check_branch
      %95 = sbr.rel (0) target = $region49
    $region48: #{tpu_custom_call.1} parent=1 // pred_region
      %96 = dma.done [#allocation11], 256
    $region49: #{tpu_custom_call.1} parent=1 // pred_fallthru
      _
    %v98 = vld [vmem:[#allocation2] sm:$0xff]
    %v99 = vpack.c.bf16 %v98, %v98
    %v100 = vld [vmem:[#allocation9] ss:$4 sm:$0xf]
    %s101 = scalar_lea.vmem [#allocation9], 1
    %v102 = vld [vmem:[%s101] ss:$4 sm:$0xf]
    %s103 = scalar_lea.vmem [#allocation9], 2
    %v104 = vld [vmem:[%s103] ss:$4 sm:$0xf]
    %v105 = vld [vmem:[#allocation10] ss:$8 sm:$0x3]
    %s106 = scalar_lea.vmem [#allocation10], 1
    %v107 = vld [vmem:[%s106] ss:$8 sm:$0x3]
    %s108 = scalar_lea.vmem [#allocation10], 2
    %v109 = vld [vmem:[%s108] ss:$8 sm:$0x3]
    %s110 = scalar_lea.vmem [#allocation10], 3
    %v111 = vld [vmem:[%s110] ss:$8 sm:$0x3]
    %s112 = scalar_lea.vmem [#allocation10], 4
    %v113 = vld [vmem:[%s112] ss:$8 sm:$0x3]
    %v114 = vld [vmem:[#allocation10 + $0x5] ss:$0 sm:$0xff]
    %v115 = vld [vmem:[#allocation4] sm:$0x77]
    %v116 = vld [vmem:[#allocation4 + $0x8] sm:$0x77]
    %v118 = vlaneseq
    %v119 = vshrl.u32 %v118, 7
    %v120 = vsub.s32 0, %v119
    %v121 = vrot.slane %v100, %v120
    %v122 = vlaneseq
    %v123 = vshrl.u32 %v122, 7
    %v124 = vsub.s32 1, %v123
    %v125 = vrot.slane %v100, %v124
    %v126 = vlaneseq
    %v127 = vshrl.u32 %v126, 7
    %v128 = vsub.s32 2, %v127
    %v129 = vrot.slane %v100, %v128
    %v130 = vlaneseq
    %v131 = vshrl.u32 %v130, 7
    %v132 = vsub.s32 3, %v131
    %v133 = vrot.slane %v100, %v132
    %v140 = vunpack.c.l.b16 %v115
    %v141 = vunpack.c.h.b16 %v115
    %v142 = vunpack.c.l.b16 %v116
    %v143 = vunpack.c.h.b16 %v116
    %v144 = vpack.c.b16 %v140, %v140
    %v145 = vpack.c.b16 %v141, %v141
    %v146 = vpack.c.b16 %v142, %v142
    %v147 = vpack.c.b16 %v143, %v143
    %vm148 = vcmask 48128
    %v150 = vsel %vm148, %v99, 0
    %vm152 = vcmask 1042432
    %v154 = vsel %vm152, %v144, 0
    %v157 = vsel %vm152, %v145, 0
    %v160 = vsel %vm152, %v146, 0
    %v163 = vsel %vm152, %v147, 0
    %165 = vmatprep.subr.bf16.mxu0 0
    %166 = vmatpush1.bf16.msra.mxu0 0
    %167 = vmatprep.subr.bf16.mxu0 0
    %168 = vmatpush1.bf16.msra.mxu0 0
    %169 = vmatprep.subr.bf16.mxu0 0
    %170 = vmatpush1.bf16.msra.mxu0 0
    %171 = vmatprep.subr.bf16.mxu0 0
    %172 = vmatpush1.bf16.msra.mxu0 0
    %173 = vmatprep.subr.bf16.mxu0 0
    %174 = vmatpush1.bf16.msra.mxu0 0
    %175 = vmatprep.subr.bf16.mxu0 0
    %176 = vmatpush1.bf16.msra.mxu0 0
    %177 = vmatprep.subr.bf16.mxu0 0
    %178 = vmatpush1.bf16.msra.mxu0 0
    %179 = vmatprep.subr.bf16.mxu0 %v157
    %180 = vmatpush1.bf16.msra.mxu0 %v154
    %181 = vmatprep.subr.bf16.mxu0 0
    %182 = vmatpush2.bf16.msra.mxu0 0
    %183 = vmatprep.subr.bf16.mxu0 0
    %184 = vmatpush2.bf16.msra.mxu0 0
    %185 = vmatprep.subr.bf16.mxu0 0
    %186 = vmatpush2.bf16.msra.mxu0 0
    %187 = vmatprep.subr.bf16.mxu0 0
    %188 = vmatpush2.bf16.msra.mxu0 0
    %189 = vmatprep.subr.bf16.mxu0 0
    %190 = vmatpush2.bf16.msra.mxu0 0
    %191 = vmatprep.subr.bf16.mxu0 0
    %192 = vmatpush2.bf16.msra.mxu0 0
    %193 = vmatprep.subr.bf16.mxu0 0
    %194 = vmatpush2.bf16.msra.mxu0 0
    %195 = vmatprep.subr.bf16.mxu0 0
    %196 = vmatpush2.bf16.msra.mxu0 0
    %197 = vmatprep.mubr.bf16.mxu0 0
    %198 = vmatmul.mubr.bf16.gmra.mxu0 %v150
    %v199 = vpop.f32.mrf.mxu0
    %v200 = vadd.f32 %v121, %v199
    %v201 = vpop.f32.mrf.mxu0
    %v202 = vadd.f32 %v125, %v201
    %v203 = vpop.f32.mrf.mxu0
    %v204 = vpop.f32.mrf.mxu0
    %205 = vdwg.mxu0
    %206 = vmatprep.subr.bf16.mxu0 0
    %207 = vmatpush1.bf16.msra.mxu0 0
    %208 = vmatprep.subr.bf16.mxu0 0
    %209 = vmatpush1.bf16.msra.mxu0 0
    %210 = vmatprep.subr.bf16.mxu0 0
    %211 = vmatpush1.bf16.msra.mxu0 0
    %212 = vmatprep.subr.bf16.mxu0 0
    %213 = vmatpush1.bf16.msra.mxu0 0
    %214 = vmatprep.subr.bf16.mxu0 0
    %215 = vmatpush1.bf16.msra.mxu0 0
    %216 = vmatprep.subr.bf16.mxu0 0
    %217 = vmatpush1.bf16.msra.mxu0 0
    %218 = vmatprep.subr.bf16.mxu0 0
    %219 = vmatpush1.bf16.msra.mxu0 0
    %220 = vmatprep.subr.bf16.mxu0 %v163
    %221 = vmatpush1.bf16.msra.mxu0 %v160
    %222 = vmatprep.subr.bf16.mxu0 0
    %223 = vmatpush2.bf16.msra.mxu0 0
    %224 = vmatprep.subr.bf16.mxu0 0
    %225 = vmatpush2.bf16.msra.mxu0 0
    %226 = vmatprep.subr.bf16.mxu0 0
    %227 = vmatpush2.bf16.msra.mxu0 0
    %228 = vmatprep.subr.bf16.mxu0 0
    %229 = vmatpush2.bf16.msra.mxu0 0
    %230 = vmatprep.subr.bf16.mxu0 0
    %231 = vmatpush2.bf16.msra.mxu0 0
    %232 = vmatprep.subr.bf16.mxu0 0
    %233 = vmatpush2.bf16.msra.mxu0 0
    %234 = vmatprep.subr.bf16.mxu0 0
    %235 = vmatpush2.bf16.msra.mxu0 0
    %236 = vmatprep.subr.bf16.mxu0 0
    %237 = vmatpush2.bf16.msra.mxu0 0
    %238 = vmatprep.mubr.bf16.mxu0 0
    %239 = vmatmul.mubr.bf16.gmra.mxu0 %v150
    %v240 = vpop.f32.mrf.mxu0
    %v241 = vadd.f32 %v129, %v240
    %v242 = vpop.f32.mrf.mxu0
    %v243 = vadd.f32 %v133, %v242
    %v244 = vpop.f32.mrf.mxu0
    %v245 = vpop.f32.mrf.mxu0
    %246 = vdwg.mxu0
    %v247 = vadd.f32 %v200, %v202
    %v248 = vadd.f32 %v247, %v241
    %v249 = vadd.f32 %v248, %v243
    %250 = vadd.xlane.f32.xlu0 %v249
    %v251 = vpop.xlane.xlu0 %250
    %v252 = vrcp.pop 512.0
    %v253 = vmul.f32 %v251, %v252
    %v254 = vsub.f32 %v200, %v253
    %v255 = vsub.f32 %v202, %v253
    %v256 = vsub.f32 %v241, %v253
    %v257 = vsub.f32 %v243, %v253
    %v258 = vmul.f32 %v254, %v254
    %v259 = vmul.f32 %v255, %v255
    %v260 = vmul.f32 %v256, %v256
    %v261 = vmul.f32 %v257, %v257
    %v262 = vadd.f32 %v258, %v259
    %v263 = vadd.f32 %v262, %v260
    %v264 = vadd.f32 %v263, %v261
    %265 = vadd.xlane.f32.xlu0 %v264
    %v266 = vpop.xlane.xlu0 %265
    %v267 = vmul.f32 %v266, %v252
    %v268 = vadd.f32 %v267, 1e-05
    %v269 = vrsqrt.pop %v268
    %v270 = vmul.f32 %v254, %v269
    %v271 = vmul.f32 %v255, %v269
    %v272 = vmul.f32 %v256, %v269
    %v273 = vmul.f32 %v257, %v269
    %v275 = vlaneseq
    %v276 = vshrl.u32 %v275, 7
    %v277 = vsub.s32 0, %v276
    %v278 = vrot.slane %v102, %v277
    %v279 = vlaneseq
    %v280 = vshrl.u32 %v279, 7
    %v281 = vsub.s32 1, %v280
    %v282 = vrot.slane %v102, %v281
    %v283 = vlaneseq
    %v284 = vshrl.u32 %v283, 7
    %v285 = vsub.s32 2, %v284
    %v286 = vrot.slane %v102, %v285
    %v287 = vlaneseq
    %v288 = vshrl.u32 %v287, 7
    %v289 = vsub.s32 3, %v288
    %v290 = vrot.slane %v102, %v289
    %v295 = vmul.f32 %v270, %v278
    %v296 = vmul.f32 %v271, %v282
    %v297 = vmul.f32 %v272, %v286
    %v298 = vmul.f32 %v273, %v290
    %v300 = vlaneseq
    %v301 = vshrl.u32 %v300, 7
    %v302 = vsub.s32 0, %v301
    %v303 = vrot.slane %v104, %v302
    %v304 = vlaneseq
    %v305 = vshrl.u32 %v304, 7
    %v306 = vsub.s32 1, %v305
    %v307 = vrot.slane %v104, %v306
    %v308 = vlaneseq
    %v309 = vshrl.u32 %v308, 7
    %v310 = vsub.s32 2, %v309
    %v311 = vrot.slane %v104, %v310
    %v312 = vlaneseq
    %v313 = vshrl.u32 %v312, 7
    %v314 = vsub.s32 3, %v313
    %v315 = vrot.slane %v104, %v314
    %v320 = vadd.f32 %v295, %v303
    %v321 = vadd.f32 %v296, %v307
    %v322 = vadd.f32 %v297, %v311
    %v323 = vadd.f32 %v298, %v315
    %v324 = vmax.f32 %v320, 0.0
    %v325 = vmax.f32 %v321, 0.0
    %v326 = vmax.f32 %v322, 0.0
    %v327 = vmax.f32 %v323, 0.0
    %v328 = vpack.c.bf16 %v324, %v324
    %v329 = vpack.c.bf16 %v325, %v325
    %v330 = vpack.c.bf16 %v326, %v326
    %v331 = vpack.c.bf16 %v327, %v327
    %v332 = vld [vmem:[#allocation6] sm:$0xff]
    %v333 = vld [vmem:[#allocation6 + $0x8] sm:$0xff]
    %v334 = vld [vmem:[#allocation6 + $0x10] sm:$0xff]
    %v335 = vld [vmem:[#allocation6 + $0x18] sm:$0xff]
    %v336 = vld [vmem:[#allocation6 + $0x20] sm:$0xff]
    %v337 = vld [vmem:[#allocation6 + $0x28] sm:$0xff]
    %v338 = vld [vmem:[#allocation6 + $0x30] sm:$0xff]
    %v339 = vld [vmem:[#allocation6 + $0x38] sm:$0xff]
    %v340 = vld [vmem:[#allocation6 + $0x40] sm:$0xff]
    %v341 = vld [vmem:[#allocation6 + $0x48] sm:$0xff]
    %v342 = vld [vmem:[#allocation6 + $0x50] sm:$0xff]
    %v343 = vld [vmem:[#allocation6 + $0x58] sm:$0xff]
    %v344 = vld [vmem:[#allocation6 + $0x60] sm:$0xff]
    %v345 = vld [vmem:[#allocation6 + $0x68] sm:$0xff]
    %v346 = vld [vmem:[#allocation6 + $0x70] sm:$0xff]
    %v347 = vld [vmem:[#allocation6 + $0x78] sm:$0xff]
    %v348 = vld [vmem:[#allocation6 + $0x80] sm:$0xff]
    %v349 = vld [vmem:[#allocation6 + $0x88] sm:$0xff]
    %v350 = vld [vmem:[#allocation6 + $0x90] sm:$0xff]
    %v351 = vld [vmem:[#allocation6 + $0x98] sm:$0xff]
    %v352 = vld [vmem:[#allocation6 + $0xa0] sm:$0xff]
    %v353 = vld [vmem:[#allocation6 + $0xa8] sm:$0xff]
    %v354 = vld [vmem:[#allocation6 + $0xb0] sm:$0xff]
    %v355 = vld [vmem:[#allocation6 + $0xb8] sm:$0xff]
    %v356 = vld [vmem:[#allocation6 + $0xc0] sm:$0xff]
    %v357 = vld [vmem:[#allocation6 + $0xc8] sm:$0xff]
    %v358 = vld [vmem:[#allocation6 + $0xd0] sm:$0xff]
    %v359 = vld [vmem:[#allocation6 + $0xd8] sm:$0xff]
    %v360 = vld [vmem:[#allocation6 + $0xe0] sm:$0xff]
    %v361 = vld [vmem:[#allocation6 + $0xe8] sm:$0xff]
    %v362 = vld [vmem:[#allocation6 + $0xf0] sm:$0xff]
    %v363 = vld [vmem:[#allocation6 + $0xf8] sm:$0xff]
    %v364 = vld [vmem:[#allocation6 + $0x100] sm:$0xff]
    %v365 = vld [vmem:[#allocation6 + $0x108] sm:$0xff]
    %v366 = vld [vmem:[#allocation6 + $0x110] sm:$0xff]
    %v367 = vld [vmem:[#allocation6 + $0x118] sm:$0xff]
    %v368 = vld [vmem:[#allocation6 + $0x120] sm:$0xff]
    %v369 = vld [vmem:[#allocation6 + $0x128] sm:$0xff]
    %v370 = vld [vmem:[#allocation6 + $0x130] sm:$0xff]
    %v371 = vld [vmem:[#allocation6 + $0x138] sm:$0xff]
    %v372 = vld [vmem:[#allocation6 + $0x140] sm:$0xff]
    %v373 = vld [vmem:[#allocation6 + $0x148] sm:$0xff]
    %v374 = vld [vmem:[#allocation6 + $0x150] sm:$0xff]
    %v375 = vld [vmem:[#allocation6 + $0x158] sm:$0xff]
    %v376 = vld [vmem:[#allocation6 + $0x160] sm:$0xff]
    %v377 = vld [vmem:[#allocation6 + $0x168] sm:$0xff]
    %v378 = vld [vmem:[#allocation6 + $0x170] sm:$0xff]
    %v379 = vld [vmem:[#allocation6 + $0x178] sm:$0xff]
    %v380 = vld [vmem:[#allocation6 + $0x180] sm:$0xff]
    %v381 = vld [vmem:[#allocation6 + $0x188] sm:$0xff]
    %v382 = vld [vmem:[#allocation6 + $0x190] sm:$0xff]
    %v383 = vld [vmem:[#allocation6 + $0x198] sm:$0xff]
    %v384 = vld [vmem:[#allocation6 + $0x1a0] sm:$0xff]
    %v385 = vld [vmem:[#allocation6 + $0x1a8] sm:$0xff]
    %v386 = vld [vmem:[#allocation6 + $0x1b0] sm:$0xff]
    %v387 = vld [vmem:[#allocation6 + $0x1b8] sm:$0xff]
    %v388 = vld [vmem:[#allocation6 + $0x1c0] sm:$0xff]
    %v389 = vld [vmem:[#allocation6 + $0x1c8] sm:$0xff]
    %v390 = vld [vmem:[#allocation6 + $0x1d0] sm:$0xff]
    %v391 = vld [vmem:[#allocation6 + $0x1d8] sm:$0xff]
    %v392 = vld [vmem:[#allocation6 + $0x1e0] sm:$0xff]
    %v393 = vld [vmem:[#allocation6 + $0x1e8] sm:$0xff]
    %v394 = vld [vmem:[#allocation6 + $0x1f0] sm:$0xff]
    %v395 = vld [vmem:[#allocation6 + $0x1f8] sm:$0xff]
    %v397 = vlaneseq
    %v398 = vshrl.u32 %v397, 7
    %v399 = vsub.s32 0, %v398
    %v400 = vrot.slane %v105, %v399
    %v401 = vlaneseq
    %v402 = vshrl.u32 %v401, 7
    %v403 = vsub.s32 1, %v402
    %v404 = vrot.slane %v105, %v403
    %v471 = vunpack.c.l.b16 %v332
    %v472 = vunpack.c.h.b16 %v332
    %v473 = vunpack.c.l.b16 %v333
    %v474 = vunpack.c.h.b16 %v333
    %v475 = vunpack.c.l.b16 %v334
    %v476 = vunpack.c.h.b16 %v334
    %v477 = vunpack.c.l.b16 %v335
    %v478 = vunpack.c.h.b16 %v335
    %v479 = vunpack.c.l.b16 %v336
    %v480 = vunpack.c.h.b16 %v336
    %v481 = vunpack.c.l.b16 %v337
    %v482 = vunpack.c.h.b16 %v337
    %v483 = vunpack.c.l.b16 %v338
    %v484 = vunpack.c.h.b16 %v338
    %v485 = vunpack.c.l.b16 %v339
    %v486 = vunpack.c.h.b16 %v339
    %v487 = vunpack.c.l.b16 %v340
    %v488 = vunpack.c.h.b16 %v340
    %v489 = vunpack.c.l.b16 %v341
    %v490 = vunpack.c.h.b16 %v341
    %v491 = vunpack.c.l.b16 %v342
    %v492 = vunpack.c.h.b16 %v342
    %v493 = vunpack.c.l.b16 %v343
    %v494 = vunpack.c.h.b16 %v343
    %v495 = vunpack.c.l.b16 %v344
    %v496 = vunpack.c.h.b16 %v344
    %v497 = vunpack.c.l.b16 %v345
    %v498 = vunpack.c.h.b16 %v345
    %v499 = vunpack.c.l.b16 %v346
    %v500 = vunpack.c.h.b16 %v346
    %v501 = vunpack.c.l.b16 %v347
    %v502 = vunpack.c.h.b16 %v347
    %v503 = vunpack.c.l.b16 %v348
    %v504 = vunpack.c.h.b16 %v348
    %v505 = vunpack.c.l.b16 %v349
    %v506 = vunpack.c.h.b16 %v349
    %v507 = vunpack.c.l.b16 %v350
    %v508 = vunpack.c.h.b16 %v350
    %v509 = vunpack.c.l.b16 %v351
    %v510 = vunpack.c.h.b16 %v351
    %v511 = vunpack.c.l.b16 %v352
    %v512 = vunpack.c.h.b16 %v352
    %v513 = vunpack.c.l.b16 %v353
    %v514 = vunpack.c.h.b16 %v353
    %v515 = vunpack.c.l.b16 %v354
    %v516 = vunpack.c.h.b16 %v354
    %v517 = vunpack.c.l.b16 %v355
    %v518 = vunpack.c.h.b16 %v355
    %v519 = vunpack.c.l.b16 %v356
    %v520 = vunpack.c.h.b16 %v356
    %v521 = vunpack.c.l.b16 %v357
    %v522 = vunpack.c.h.b16 %v357
    %v523 = vunpack.c.l.b16 %v358
    %v524 = vunpack.c.h.b16 %v358
    %v525 = vunpack.c.l.b16 %v359
    %v526 = vunpack.c.h.b16 %v359
    %v527 = vunpack.c.l.b16 %v360
    %v528 = vunpack.c.h.b16 %v360
    %v529 = vunpack.c.l.b16 %v361
    %v530 = vunpack.c.h.b16 %v361
    %v531 = vunpack.c.l.b16 %v362
    %v532 = vunpack.c.h.b16 %v362
    %v533 = vunpack.c.l.b16 %v363
    %v534 = vunpack.c.h.b16 %v363
    %v535 = vunpack.c.l.b16 %v364
    %v536 = vunpack.c.h.b16 %v364
    %v537 = vunpack.c.l.b16 %v365
    %v538 = vunpack.c.h.b16 %v365
    %v539 = vunpack.c.l.b16 %v366
    %v540 = vunpack.c.h.b16 %v366
    %v541 = vunpack.c.l.b16 %v367
    %v542 = vunpack.c.h.b16 %v367
    %v543 = vunpack.c.l.b16 %v368
    %v544 = vunpack.c.h.b16 %v368
    %v545 = vunpack.c.l.b16 %v369
    %v546 = vunpack.c.h.b16 %v369
    %v547 = vunpack.c.l.b16 %v370
    %v548 = vunpack.c.h.b16 %v370
    %v549 = vunpack.c.l.b16 %v371
    %v550 = vunpack.c.h.b16 %v371
    %v551 = vunpack.c.l.b16 %v372
    %v552 = vunpack.c.h.b16 %v372
    %v553 = vunpack.c.l.b16 %v373
    %v554 = vunpack.c.h.b16 %v373
    %v555 = vunpack.c.l.b16 %v374
    %v556 = vunpack.c.h.b16 %v374
    %v557 = vunpack.c.l.b16 %v375
    %v558 = vunpack.c.h.b16 %v375
    %v559 = vunpack.c.l.b16 %v376
    %v560 = vunpack.c.h.b16 %v376
    %v561 = vunpack.c.l.b16 %v377
    %v562 = vunpack.c.h.b16 %v377
    %v563 = vunpack.c.l.b16 %v378
    %v564 = vunpack.c.h.b16 %v378
    %v565 = vunpack.c.l.b16 %v379
    %v566 = vunpack.c.h.b16 %v379
    %v567 = vunpack.c.l.b16 %v380
    %v568 = vunpack.c.h.b16 %v380
    %v569 = vunpack.c.l.b16 %v381
    %v570 = vunpack.c.h.b16 %v381
    %v571 = vunpack.c.l.b16 %v382
    %v572 = vunpack.c.h.b16 %v382
    %v573 = vunpack.c.l.b16 %v383
    %v574 = vunpack.c.h.b16 %v383
    %v575 = vunpack.c.l.b16 %v384
    %v576 = vunpack.c.h.b16 %v384
    %v577 = vunpack.c.l.b16 %v385
    %v578 = vunpack.c.h.b16 %v385
    %v579 = vunpack.c.l.b16 %v386
    %v580 = vunpack.c.h.b16 %v386
    %v581 = vunpack.c.l.b16 %v387
    %v582 = vunpack.c.h.b16 %v387
    %v583 = vunpack.c.l.b16 %v388
    %v584 = vunpack.c.h.b16 %v388
    %v585 = vunpack.c.l.b16 %v389
    %v586 = vunpack.c.h.b16 %v389
    %v587 = vunpack.c.l.b16 %v390
    %v588 = vunpack.c.h.b16 %v390
    %v589 = vunpack.c.l.b16 %v391
    %v590 = vunpack.c.h.b16 %v391
    %v591 = vunpack.c.l.b16 %v392
    %v592 = vunpack.c.h.b16 %v392
    %v593 = vunpack.c.l.b16 %v393
    %v594 = vunpack.c.h.b16 %v393
    %v595 = vunpack.c.l.b16 %v394
    %v596 = vunpack.c.h.b16 %v394
    %v597 = vunpack.c.l.b16 %v395
    %v598 = vunpack.c.h.b16 %v395
    %v599 = vpack.c.b16 %v473, %v471
    %v600 = vpack.c.b16 %v474, %v472
    %v601 = vpack.c.b16 %v477, %v475
    %v602 = vpack.c.b16 %v478, %v476
    %v603 = vpack.c.b16 %v481, %v479
    %v604 = vpack.c.b16 %v482, %v480
    %v605 = vpack.c.b16 %v485, %v483
    %v606 = vpack.c.b16 %v486, %v484
    %v607 = vpack.c.b16 %v489, %v487
    %v608 = vpack.c.b16 %v490, %v488
    %v609 = vpack.c.b16 %v493, %v491
    %v610 = vpack.c.b16 %v494, %v492
    %v611 = vpack.c.b16 %v497, %v495
    %v612 = vpack.c.b16 %v498, %v496
    %v613 = vpack.c.b16 %v501, %v499
    %v614 = vpack.c.b16 %v502, %v500
    %v615 = vpack.c.b16 %v505, %v503
    %v616 = vpack.c.b16 %v506, %v504
    %v617 = vpack.c.b16 %v509, %v507
    %v618 = vpack.c.b16 %v510, %v508
    %v619 = vpack.c.b16 %v513, %v511
    %v620 = vpack.c.b16 %v514, %v512
    %v621 = vpack.c.b16 %v517, %v515
    %v622 = vpack.c.b16 %v518, %v516
    %v623 = vpack.c.b16 %v521, %v519
    %v624 = vpack.c.b16 %v522, %v520
    %v625 = vpack.c.b16 %v525, %v523
    %v626 = vpack.c.b16 %v526, %v524
    %v627 = vpack.c.b16 %v529, %v527
    %v628 = vpack.c.b16 %v530, %v528
    %v629 = vpack.c.b16 %v533, %v531
    %v630 = vpack.c.b16 %v534, %v532
    %v631 = vpack.c.b16 %v537, %v535
    %v632 = vpack.c.b16 %v538, %v536
    %v633 = vpack.c.b16 %v541, %v539
    %v634 = vpack.c.b16 %v542, %v540
    %v635 = vpack.c.b16 %v545, %v543
    %v636 = vpack.c.b16 %v546, %v544
    %v637 = vpack.c.b16 %v549, %v547
    %v638 = vpack.c.b16 %v550, %v548
    %v639 = vpack.c.b16 %v553, %v551
    %v640 = vpack.c.b16 %v554, %v552
    %v641 = vpack.c.b16 %v557, %v555
    %v642 = vpack.c.b16 %v558, %v556
    %v643 = vpack.c.b16 %v561, %v559
    %v644 = vpack.c.b16 %v562, %v560
    %v645 = vpack.c.b16 %v565, %v563
    %v646 = vpack.c.b16 %v566, %v564
    %v647 = vpack.c.b16 %v569, %v567
    %v648 = vpack.c.b16 %v570, %v568
    %v649 = vpack.c.b16 %v573, %v571
    %v650 = vpack.c.b16 %v574, %v572
    %v651 = vpack.c.b16 %v577, %v575
    %v652 = vpack.c.b16 %v578, %v576
    %v653 = vpack.c.b16 %v581, %v579
    %v654 = vpack.c.b16 %v582, %v580
    %v655 = vpack.c.b16 %v585, %v583
    %v656 = vpack.c.b16 %v586, %v584
    %v657 = vpack.c.b16 %v589, %v587
    %v658 = vpack.c.b16 %v590, %v588
    %v659 = vpack.c.b16 %v593, %v591
    %v660 = vpack.c.b16 %v594, %v592
    %v661 = vpack.c.b16 %v597, %v595
    %v662 = vpack.c.b16 %v598, %v596
    %727 = vmatprep.subr.bf16.mxu0 %v614
    %728 = vmatpush1.bf16.msra.mxu0 %v613
    %729 = vmatprep.subr.bf16.mxu0 %v612
    %730 = vmatpush1.bf16.msra.mxu0 %v611
    %731 = vmatprep.subr.bf16.mxu0 %v610
    %732 = vmatpush1.bf16.msra.mxu0 %v609
    %733 = vmatprep.subr.bf16.mxu0 %v608
    %734 = vmatpush1.bf16.msra.mxu0 %v607
    %735 = vmatprep.subr.bf16.mxu0 %v606
    %736 = vmatpush1.bf16.msra.mxu0 %v605
    %737 = vmatprep.subr.bf16.mxu0 %v604
    %738 = vmatpush1.bf16.msra.mxu0 %v603
    %739 = vmatprep.subr.bf16.mxu0 %v602
    %740 = vmatpush1.bf16.msra.mxu0 %v601
    %741 = vmatprep.subr.bf16.mxu0 %v600
    %742 = vmatpush1.bf16.msra.mxu0 %v599
    %743 = vmatprep.subr.bf16.mxu0 %v630
    %744 = vmatpush2.bf16.msra.mxu0 %v629
    %745 = vmatprep.subr.bf16.mxu0 %v628
    %746 = vmatpush2.bf16.msra.mxu0 %v627
    %747 = vmatprep.subr.bf16.mxu0 %v626
    %748 = vmatpush2.bf16.msra.mxu0 %v625
    %749 = vmatprep.subr.bf16.mxu0 %v624
    %750 = vmatpush2.bf16.msra.mxu0 %v623
    %751 = vmatprep.subr.bf16.mxu0 %v622
    %752 = vmatpush2.bf16.msra.mxu0 %v621
    %753 = vmatprep.subr.bf16.mxu0 %v620
    %754 = vmatpush2.bf16.msra.mxu0 %v619
    %755 = vmatprep.subr.bf16.mxu0 %v618
    %756 = vmatpush2.bf16.msra.mxu0 %v617
    %757 = vmatprep.subr.bf16.mxu0 %v616
    %758 = vmatpush2.bf16.msra.mxu0 %v615
    %759 = vmatprep.mubr.bf16.mxu0 %v329
    %760 = vmatmul.mubr.bf16.gmra.mxu0 %v328
    %v761 = vpop.f32.mrf.mxu0
    %v762 = vadd.f32 %v400, %v761
    %v763 = vpop.f32.mrf.mxu0
    %v764 = vadd.f32 %v404, %v763
    %v765 = vpop.f32.mrf.mxu0
    %v766 = vpop.f32.mrf.mxu0
    %767 = vdwg.mxu0
    %768 = vmatprep.subr.bf16.mxu0 %v646
    %769 = vmatpush1.bf16.msra.mxu0 %v645
    %770 = vmatprep.subr.bf16.mxu0 %v644
    %771 = vmatpush1.bf16.msra.mxu0 %v643
    %772 = vmatprep.subr.bf16.mxu0 %v642
    %773 = vmatpush1.bf16.msra.mxu0 %v641
    %774 = vmatprep.subr.bf16.mxu0 %v640
    %775 = vmatpush1.bf16.msra.mxu0 %v639
    %776 = vmatprep.subr.bf16.mxu0 %v638
    %777 = vmatpush1.bf16.msra.mxu0 %v637
    %778 = vmatprep.subr.bf16.mxu0 %v636
    %779 = vmatpush1.bf16.msra.mxu0 %v635
    %780 = vmatprep.subr.bf16.mxu0 %v634
    %781 = vmatpush1.bf16.msra.mxu0 %v633
    %782 = vmatprep.subr.bf16.mxu0 %v632
    %783 = vmatpush1.bf16.msra.mxu0 %v631
    %784 = vmatprep.subr.bf16.mxu0 %v662
    %785 = vmatpush2.bf16.msra.mxu0 %v661
    %786 = vmatprep.subr.bf16.mxu0 %v660
    %787 = vmatpush2.bf16.msra.mxu0 %v659
    %788 = vmatprep.subr.bf16.mxu0 %v658
    %789 = vmatpush2.bf16.msra.mxu0 %v657
    %790 = vmatprep.subr.bf16.mxu0 %v656
    %791 = vmatpush2.bf16.msra.mxu0 %v655
    %792 = vmatprep.subr.bf16.mxu0 %v654
    %793 = vmatpush2.bf16.msra.mxu0 %v653
    %794 = vmatprep.subr.bf16.mxu0 %v652
    %795 = vmatpush2.bf16.msra.mxu0 %v651
    %796 = vmatprep.subr.bf16.mxu0 %v650
    %797 = vmatpush2.bf16.msra.mxu0 %v649
    %798 = vmatprep.subr.bf16.mxu0 %v648
    %799 = vmatpush2.bf16.msra.mxu0 %v647
    %800 = vmatprep.mubr.bf16.mxu0 %v331
    %801 = vmatmul.mubr.bf16.gmra.mxu0 %v330
    %v802 = vpop.f32.mrf.mxu0
    %v803 = vadd.f32 %v762, %v802
    %v804 = vpop.f32.mrf.mxu0
    %v805 = vadd.f32 %v764, %v804
    %v806 = vpop.f32.mrf.mxu0
    %v807 = vpop.f32.mrf.mxu0
    %808 = vdwg.mxu0
    %v809 = vadd.f32 %v803, %v805
    %810 = vadd.xlane.f32.xlu0 %v809
    %v811 = vpop.xlane.xlu0 %810
    %v812 = vrcp.pop 256.0
    %v813 = vmul.f32 %v811, %v812
    %v814 = vsub.f32 %v803, %v813
    %v815 = vsub.f32 %v805, %v813
    %v816 = vmul.f32 %v814, %v814
    %v817 = vmul.f32 %v815, %v815
    %v818 = vadd.f32 %v816, %v817
    %819 = vadd.xlane.f32.xlu0 %v818
    %v820 = vpop.xlane.xlu0 %819
    %v821 = vmul.f32 %v820, %v812
    %v822 = vadd.f32 %v821, 1e-05
    %v823 = vrsqrt.pop %v822
    %v824 = vmul.f32 %v814, %v823
    %v825 = vmul.f32 %v815, %v823
    %v827 = vlaneseq
    %v828 = vshrl.u32 %v827, 7
    %v829 = vsub.s32 0, %v828
    %v830 = vrot.slane %v107, %v829
    %v831 = vlaneseq
    %v832 = vshrl.u32 %v831, 7
    %v833 = vsub.s32 1, %v832
    %v834 = vrot.slane %v107, %v833
    %v837 = vmul.f32 %v824, %v830
    %v838 = vmul.f32 %v825, %v834
    %v840 = vlaneseq
    %v841 = vshrl.u32 %v840, 7
    %v842 = vsub.s32 0, %v841
    %v843 = vrot.slane %v109, %v842
    %v844 = vlaneseq
    %v845 = vshrl.u32 %v844, 7
    %v846 = vsub.s32 1, %v845
    %v847 = vrot.slane %v109, %v846
    %v850 = vadd.f32 %v837, %v843
    %v851 = vadd.f32 %v838, %v847
    %v852 = vld [vmem:[#allocation7] sm:$0xff]
    %v853 = vld [vmem:[#allocation7 + $0x8] sm:$0x11]
    %v855 = vlaneseq
    %v856 = vshrl.u32 %v855, 7
    %v857 = vsub.s32 0, %v856
    %v858 = vrot.slane %v111, %v857
    %v859 = vlaneseq
    %v860 = vshrl.u32 %v859, 7
    %v861 = vsub.s32 1, %v860
    %v862 = vrot.slane %v111, %v861
    %866 = vrot.lane.b32.xlu0 %v99, 122
    %v867 = vpop.permute.xlu0 %866
    %v870 = vunpack.c.l.b16 %v852
    %v871 = vunpack.c.h.b16 %v852
    %v872 = vunpack.c.l.b16 %v853
    %v873 = vunpack.c.h.b16 %v853
    %v874 = vpack.c.b16 %v872, %v870
    %v875 = vpack.c.b16 %v873, %v871
    %vm876 = vcmask 72704
    %v878 = vsel %vm876, %v867, 0
    %vm880 = vcmask 1043456
    %vm881 = vcmask 1044480
    %v882 = vsel %vm880, 4294967295, 65535
    %v883 = vsel %vm881, %v882, 0
    %v885 = vand.u32 %v874, %v883
    %v888 = vand.u32 %v875, %v883
    %890 = vmatprep.subr.bf16.mxu0 0
    %891 = vmatpush1.bf16.msra.mxu0 0
    %892 = vmatprep.subr.bf16.mxu0 0
    %893 = vmatpush1.bf16.msra.mxu0 0
    %894 = vmatprep.subr.bf16.mxu0 0
    %895 = vmatpush1.bf16.msra.mxu0 0
    %896 = vmatprep.subr.bf16.mxu0 0
    %897 = vmatpush1.bf16.msra.mxu0 0
    %898 = vmatprep.subr.bf16.mxu0 0
    %899 = vmatpush1.bf16.msra.mxu0 0
    %900 = vmatprep.subr.bf16.mxu0 0
    %901 = vmatpush1.bf16.msra.mxu0 0
    %902 = vmatprep.subr.bf16.mxu0 0
    %903 = vmatpush1.bf16.msra.mxu0 0
    %904 = vmatprep.subr.bf16.mxu0 %v888
    %905 = vmatpush1.bf16.msra.mxu0 %v885
    %906 = vmatprep.subr.bf16.mxu0 0
    %907 = vmatpush2.bf16.msra.mxu0 0
    %908 = vmatprep.subr.bf16.mxu0 0
    %909 = vmatpush2.bf16.msra.mxu0 0
    %910 = vmatprep.subr.bf16.mxu0 0
    %911 = vmatpush2.bf16.msra.mxu0 0
    %912 = vmatprep.subr.bf16.mxu0 0
    %913 = vmatpush2.bf16.msra.mxu0 0
    %914 = vmatprep.subr.bf16.mxu0 0
    %915 = vmatpush2.bf16.msra.mxu0 0
    %916 = vmatprep.subr.bf16.mxu0 0
    %917 = vmatpush2.bf16.msra.mxu0 0
    %918 = vmatprep.subr.bf16.mxu0 0
    %919 = vmatpush2.bf16.msra.mxu0 0
    %920 = vmatprep.subr.bf16.mxu0 0
    %921 = vmatpush2.bf16.msra.mxu0 0
    %922 = vmatprep.mubr.bf16.mxu0 0
    %923 = vmatmul.mubr.bf16.gmra.mxu0 %v878
    %v924 = vpop.f32.mrf.mxu0
    %v925 = vadd.f32 %v858, %v924
    %v926 = vpop.f32.mrf.mxu0
    %v927 = vadd.f32 %v862, %v926
    %v928 = vpop.f32.mrf.mxu0
    %v929 = vpop.f32.mrf.mxu0
    %930 = vdwg.mxu0
    %v931 = vmax.f32 %v925, 0.0
    %v932 = vmax.f32 %v927, 0.0
    %v933 = vadd.f32 %v850, %v931
    %v934 = vadd.f32 %v851, %v932
    %v935 = vmax.f32 %v933, 0.0
    %v936 = vmax.f32 %v934, 0.0
    %v938 = vlaneseq
    %v939 = vshrl.u32 %v938, 7
    %v940 = vsub.s32 0, %v939
    %v941 = vrot.slane %v113, %v940
    %v942 = vlaneseq
    %v943 = vshrl.u32 %v942, 7
    %v944 = vsub.s32 1, %v943
    %v945 = vrot.slane %v113, %v944
    %v948 = vmul.f32 %v935, %v941
    %v949 = vmul.f32 %v936, %v945
    %v950 = vadd.f32 %v948, %v949
    %951 = vadd.xlane.f32.xlu0 %v950
    %v952 = vpop.xlane.xlu0 %951
    %v953 = vadd.f32 %v952, %v114
    %vm954 = vcmask 7168
    %955 = vst.msk [vmem:[%s6] sm:$0xff] %vm954, %v953
    // Predicated region
    $region50: #{tpu_custom_call.1} parent=1 // pred_check
      _
    $region51: #{tpu_custom_call.1} parent=1 // pred_check_branch
      %957 = sbr.rel (0) target = $region53
    $region52: #{tpu_custom_call.1} parent=1 // pred_region
      _
    $region53: #{tpu_custom_call.1} parent=1 // pred_fallthru
      _
    // Predicated region
    $region54: #{tpu_custom_call.1} parent=1 // pred_check
      _
    $region55: #{tpu_custom_call.1} parent=1 // pred_check_branch
      %959 = sbr.rel (0) target = $region57
    $region56: #{tpu_custom_call.1} parent=1 // pred_region
      _
    $region57: #{tpu_custom_call.1} parent=1 // pred_fallthru
      _
    %960 = vsyncpa [#allocation3], 1
    %961 = vsyncpa [#allocation5], 1
    %962 = vsyncpa [#allocation8], 1
    %963 = vsyncpa [#allocation11], 1

</llo_original>
